<compile_context>
chip_gen: v6e
topology: v6e:2x2x1
jax: 0.10.0
libtpu: 0.0.40
codegen_flags: <defaults>
</compile_context>

<pallas_src>
import math

import jax
import jax.numpy as jnp
from jax.experimental import pallas as pl
from jax.experimental.pallas import tpu as pltpu

TAU = 2.0
INV_TAU = 1.0 / TAU
V_TH = 1.0
BN_EPS = 1e-5
VMEM_LIMIT = 32 * 1024 * 1024  # explicit scoped-VMEM budget (safe on v5e/v6e/v7x)


# --------------------------------------------------------------------------
# helpers
# --------------------------------------------------------------------------
def _pick_tile(n, cap):
    """Largest tile <= cap that divides n; tile is either n itself or a multiple of 8."""
    if n <= cap:
        return n
    t = cap - (cap % 8)
    while t >= 8:
        if n % t == 0:
            return t
        t -= 8
    return n


def _fold_lanes(scale, shift, arrays):
    """Fold (T, BN, H) elementwise tensors into a lane-dense (T, R, 128) layout.

    LIF + gate are purely elementwise, so when 128 % H == 0 and (BN*H) % 128 == 0
    we can pack 128/H rows per 128-lane vector row and tile the per-channel
    scale/shift into a (1, 128) pattern. Falls back to the original layout
    otherwise (still correct, just masked stores)."""
    T, BN, H = arrays[0].shape
    if H % 128 != 0 and 128 % H == 0 and (BN * H) % 128 == 0:
        rep = 128 // H
        R = (BN * H) // 128
        arrays = tuple(a.reshape(T, R, 128) for a in arrays)
        scale = jnp.tile(scale, (1, rep))
        shift = jnp.tile(shift, (1, rep))
    return scale, shift, arrays


# --------------------------------------------------------------------------
# Kernels
# --------------------------------------------------------------------------
def linear1_stats_kernel(x_ref, wv_ref, wg_ref, bv_ref, bg_ref,
                         v_ref, g_ref, sum_ref, sumsq_ref,
                         acc_sum, acc_sq):
    """x @ Wv + bv  and  x @ Wg + bg, with fused per-channel sum / sum-of-squares
    accumulation of the v half (for BatchNorm batch statistics)."""
    i = pl.program_id(0)

    @pl.when(i == 0)
    def _():
        acc_sum[...] = jnp.zeros_like(acc_sum)
        acc_sq[...] = jnp.zeros_like(acc_sq)

    x = x_ref[...]
    v = jnp.dot(x, wv_ref[...], preferred_element_type=jnp.float32) + bv_ref[...]
    g = jnp.dot(x, wg_ref[...], preferred_element_type=jnp.float32) + bg_ref[...]

    v_ref[...] = v.astype(v_ref.dtype)
    g_ref[...] = g.astype(g_ref.dtype)

    # Accumulate stats with VPU adds into an (8, H) scratch; reduce across
    # sublanes (XLU) only once, on the last grid step.
    tm, h = v.shape
    v8 = v.reshape(tm // 8, 8, h)
    acc_sum[...] += jnp.sum(v8, axis=0)
    acc_sq[...] += jnp.sum(v8 * v8, axis=0)

    @pl.when(i == pl.num_programs(0) - 1)
    def _():
        sum_ref[...] = jnp.sum(acc_sum[...], axis=0, keepdims=True)
        sumsq_ref[...] = jnp.sum(acc_sq[...], axis=0, keepdims=True)


def linear2_stats_kernel(x_ref, w_ref, b_ref, o_ref, sum_ref, sumsq_ref,
                         acc_sum, acc_sq):
    """x @ W + b with fused per-channel sum / sum-of-squares accumulation."""
    i = pl.program_id(0)

    @pl.when(i == 0)
    def _():
        acc_sum[...] = jnp.zeros_like(acc_sum)
        acc_sq[...] = jnp.zeros_like(acc_sq)

    o = jnp.dot(x_ref[...], w_ref[...], preferred_element_type=jnp.float32) + b_ref[...]
    o_ref[...] = o.astype(o_ref.dtype)

    tm, c = o.shape
    o8 = o.reshape(tm // 8, 8, c)
    acc_sum[...] += jnp.sum(o8, axis=0)
    acc_sq[...] += jnp.sum(o8 * o8, axis=0)

    @pl.when(i == pl.num_programs(0) - 1)
    def _():
        sum_ref[...] = jnp.sum(acc_sum[...], axis=0, keepdims=True)
        sumsq_ref[...] = jnp.sum(acc_sq[...], axis=0, keepdims=True)


def bn_lif_gate_kernel(scale_ref, shift_ref, x_ref, gate_ref, o_ref, vmem_ref):
    """BN-normalize + LIF recurrence over T (inner grid axis) + gate multiply."""
    t = pl.program_id(1)

    @pl.when(t == 0)
    def _():
        vmem_ref[...] = jnp.zeros_like(vmem_ref)

    x = x_ref[0].astype(jnp.float32) * scale_ref[...] + shift_ref[...]
    v = vmem_ref[...] + (x - vmem_ref[...]) * INV_TAU
    spike = (v >= V_TH).astype(jnp.float32)
    vmem_ref[...] = v * (1.0 - spike)         # hard reset to 0
    o_ref[0] = (gate_ref[0].astype(jnp.float32) * spike).astype(o_ref.dtype)


def bn_lif_kernel(scale_ref, shift_ref, x_ref, o_ref, vmem_ref):
    """BN-normalize + LIF recurrence over T -> output spikes."""
    t = pl.program_id(1)

    @pl.when(t == 0)
    def _():
        vmem_ref[...] = jnp.zeros_like(vmem_ref)

    x = x_ref[0].astype(jnp.float32) * scale_ref[...] + shift_ref[...]
    v = vmem_ref[...] + (x - vmem_ref[...]) * INV_TAU
    spike = (v >= V_TH).astype(jnp.float32)
    vmem_ref[...] = v * (1.0 - spike)
    o_ref[0] = spike.astype(o_ref.dtype)


# --------------------------------------------------------------------------
# Pallas wrappers
# --------------------------------------------------------------------------
def linear1_pallas(x, wv, wg, bv, bg, tm_cap=512):
    M, K = x.shape
    H = wv.shape[1]
    tm = _pick_tile(M, tm_cap)
    assert M % tm == 0 and tm % 8 == 0

    return pl.pallas_call(
        linear1_stats_kernel,
        out_shape=(
            jax.ShapeDtypeStruct((M, H), jnp.bfloat16),   # v (pre-BN)
            jax.ShapeDtypeStruct((M, H), jnp.bfloat16),   # gate
            jax.ShapeDtypeStruct((1, H), jnp.float32),    # sum(v)
            jax.ShapeDtypeStruct((1, H), jnp.float32),    # sum(v^2)
        ),
        grid_spec=pltpu.PrefetchScalarGridSpec(
            num_scalar_prefetch=0,
            grid=(M // tm,),
            in_specs=[
                pl.BlockSpec((tm, K), lambda i: (i, 0)),
                pl.BlockSpec((K, H), lambda i: (0, 0)),
                pl.BlockSpec((K, H), lambda i: (0, 0)),
                pl.BlockSpec((1, H), lambda i: (0, 0)),
                pl.BlockSpec((1, H), lambda i: (0, 0)),
            ],
            out_specs=(
                pl.BlockSpec((tm, H), lambda i: (i, 0)),
                pl.BlockSpec((tm, H), lambda i: (i, 0)),
                pl.BlockSpec((1, H), lambda i: (0, 0)),
                pl.BlockSpec((1, H), lambda i: (0, 0)),
            ),
            scratch_shapes=[pltpu.VMEM((8, H), jnp.float32),
                            pltpu.VMEM((8, H), jnp.float32)],
        ),
        compiler_params=pltpu.CompilerParams(
            dimension_semantics=("arbitrary",),
            vmem_limit_bytes=VMEM_LIMIT),
    )(x, wv, wg, bv, bg)


def linear2_pallas(x, w, b, tm_cap=512):
    M, K = x.shape
    C = w.shape[1]
    tm = _pick_tile(M, tm_cap)
    assert M % tm == 0 and tm % 8 == 0

    return pl.pallas_call(
        linear2_stats_kernel,
        out_shape=(
            jax.ShapeDtypeStruct((M, C), jnp.bfloat16),
            jax.ShapeDtypeStruct((1, C), jnp.float32),
            jax.ShapeDtypeStruct((1, C), jnp.float32),
        ),
        grid_spec=pltpu.PrefetchScalarGridSpec(
            num_scalar_prefetch=0,
            grid=(M // tm,),
            in_specs=[
                pl.BlockSpec((tm, K), lambda i: (i, 0)),
                pl.BlockSpec((K, C), lambda i: (0, 0)),
                pl.BlockSpec((1, C), lambda i: (0, 0)),
            ],
            out_specs=(
                pl.BlockSpec((tm, C), lambda i: (i, 0)),
                pl.BlockSpec((1, C), lambda i: (0, 0)),
                pl.BlockSpec((1, C), lambda i: (0, 0)),
            ),
            scratch_shapes=[pltpu.VMEM((8, C), jnp.float32),
                            pltpu.VMEM((8, C), jnp.float32)],
        ),
        compiler_params=pltpu.CompilerParams(
            dimension_semantics=("arbitrary",),
            vmem_limit_bytes=VMEM_LIMIT),
    )(x, w, b)


def bn_lif_gate_pallas(scale, shift, x_t, gate_t, tr_cap=256):
    scale, shift, (x_f, gate_f) = _fold_lanes(scale, shift, (x_t, gate_t))
    T, R, L = x_f.shape
    tr = _pick_tile(R, tr_cap)
    assert R % tr == 0

    return pl.pallas_call(
        bn_lif_gate_kernel,
        out_shape=jax.ShapeDtypeStruct((T, R, L), jnp.bfloat16),
        grid_spec=pltpu.PrefetchScalarGridSpec(
            num_scalar_prefetch=0,
            grid=(R // tr, T),
            in_specs=[
                pl.BlockSpec((1, L), lambda r, t: (0, 0)),
                pl.BlockSpec((1, L), lambda r, t: (0, 0)),
                pl.BlockSpec((1, tr, L), lambda r, t: (t, r, 0)),
                pl.BlockSpec((1, tr, L), lambda r, t: (t, r, 0)),
            ],
            out_specs=pl.BlockSpec((1, tr, L), lambda r, t: (t, r, 0)),
            scratch_shapes=[pltpu.VMEM((tr, L), jnp.float32)],
        ),
        compiler_params=pltpu.CompilerParams(
            dimension_semantics=("parallel", "arbitrary"),
            vmem_limit_bytes=VMEM_LIMIT),
    )(scale, shift, x_f, gate_f)


def bn_lif_pallas(scale, shift, x_t, tr_cap=256):
    scale, shift, (x_f,) = _fold_lanes(scale, shift, (x_t,))
    T, R, L = x_f.shape
    tr = _pick_tile(R, tr_cap)
    assert R % tr == 0

    return pl.pallas_call(
        bn_lif_kernel,
        out_shape=jax.ShapeDtypeStruct((T, R, L), jnp.float32),
        grid_spec=pltpu.PrefetchScalarGridSpec(
            num_scalar_prefetch=0,
            grid=(R // tr, T),
            in_specs=[
                pl.BlockSpec((1, L), lambda r, t: (0, 0)),
                pl.BlockSpec((1, L), lambda r, t: (0, 0)),
                pl.BlockSpec((1, tr, L), lambda r, t: (t, r, 0)),
            ],
            out_specs=pl.BlockSpec((1, tr, L), lambda r, t: (t, r, 0)),
            scratch_shapes=[pltpu.VMEM((tr, L), jnp.float32)],
        ),
        compiler_params=pltpu.CompilerParams(
            dimension_semantics=("parallel", "arbitrary"),
            vmem_limit_bytes=VMEM_LIMIT),
    )(scale, shift, x_f)


# --------------------------------------------------------------------------
# Full forward (per-channel BN scale/shift epilogue is O(C) plain JAX)
# --------------------------------------------------------------------------
def spiking_gfnn_forward(x, params):
    T, B, N, C = x.shape
    H = params["hidden_dim"]
    M = T * B * N
    BN = B * N
    assert M % 8 == 0

    x_flat = x.reshape(M, C).astype(jnp.bfloat16)

    w1 = params["w1"]
    b1 = params["b1"]
    w1v = w1[:, :H].astype(jnp.bfloat16)
    w1g = w1[:, H:].astype(jnp.bfloat16)
    b1v = b1[:, :H]
    b1g = b1[:, H:]

    # Linear 1 (v and gate written as separate outputs) + fused BN1 stats
    v_pre, gate, s1, ss1 = linear1_pallas(x_flat, w1v, w1g, b1v, b1g)

    mean1 = s1 / M
    var1 = jnp.maximum(ss1 / M - mean1 * mean1, 0.0)
    scale1 = params["bn1_gamma"] / jnp.sqrt(var1 + BN_EPS)
    shift1 = params["bn1_beta"] - mean1 * scale1

    # BN1 + LIF over T fused with gate multiply (lane-dense layout)
    gated = bn_lif_gate_pallas(scale1, shift1,
                               v_pre.reshape(T, BN, H),
                               gate.reshape(T, BN, H))        # (T, R, L) bf16

    # Linear 2 + fused BN2 stats
    out_pre, s2, ss2 = linear2_pallas(gated.reshape(M, H),
                                      params["w2"].astype(jnp.bfloat16),
                                      params["b2"])

    mean2 = s2 / M
    var2 = jnp.maximum(ss2 / M - mean2 * mean2, 0.0)
    scale2 = params["bn2_gamma"] / jnp.sqrt(var2 + BN_EPS)
    shift2 = params["bn2_beta"] - mean2 * scale2

    # BN2 + final LIF over T
    out = bn_lif_pallas(scale2, shift2, out_pre.reshape(T, BN, C))
    return out.reshape(T, B, N, C)


# --------------------------------------------------------------------------
# Pure-JAX reference (mirrors the bf16 MXU operand / bf16 intermediate path)
# --------------------------------------------------------------------------
def spiking_gfnn_reference(x, params):
    T, B, N, C = x.shape
    H = params["hidden_dim"]
    M = T * B * N

    def lif_scan(xs):  # xs: (T, BN, D)
        def step(vmem, xt):
            v = vmem + (xt - vmem) * INV_TAU
            s = (v >= V_TH).astype(jnp.float32)
            return v * (1.0 - s), s

        _, spikes = jax.lax.scan(step, jnp.zeros_like(xs[0]), xs)
        return spikes

    def bf16_dot(a, w, b):
        return jnp.dot(a.astype(jnp.bfloat16), w.astype(jnp.bfloat16),
                       preferred_element_type=jnp.float32) + b

    xf = x.reshape(M, C)
    w1, b1 = params["w1"], params["b1"]
    hv = bf16_dot(xf, w1[:, :H], b1[:, :H])
    hg = bf16_dot(xf, w1[:, H:], b1[:, H:])

    mean1 = hv.mean(0)
    var1 = hv.var(0)
    scale1 = params["bn1_gamma"][0] / jnp.sqrt(var1 + BN_EPS)
    shift1 = params["bn1_beta"][0] - mean1 * scale1

    v_bf = hv.astype(jnp.bfloat16).astype(jnp.float32)
    g_bf = hg.astype(jnp.bfloat16).astype(jnp.float32)
    vhat = v_bf * scale1 + shift1
    spikes1 = lif_scan(vhat.reshape(T, B * N, H))
    gated = (g_bf.reshape(T, B * N, H) * spikes1).astype(jnp.bfloat16)

    out_pre = bf16_dot(gated.reshape(M, H), params["w2"], params["b2"])
    mean2 = out_pre.mean(0)
    var2 = out_pre.var(0)
    scale2 = params["bn2_gamma"][0] / jnp.sqrt(var2 + BN_EPS)
    shift2 = params["bn2_beta"][0] - mean2 * scale2
    ohat = out_pre.astype(jnp.bfloat16).astype(jnp.float32) * scale2 + shift2
    spikes2 = lif_scan(ohat.reshape(T, B * N, C))
    return spikes2.reshape(T, B, N, C)


# --------------------------------------------------------------------------
if __name__ == "__main__":
    T, B, N = 4, 2, 16
    dim, hidden_dim = 32, 32
    H2 = 2 * hidden_dim

    key = jax.random.PRNGKey(0)
    k1, k2, k3, k4, kx = jax.random.split(key, 5)

    params = {
        "hidden_dim": hidden_dim,
        "w1": (jax.random.normal(k1, (dim, H2), jnp.float32) / math.sqrt(dim)),
        "b1": jax.random.normal(k2, (1, H2), jnp.float32) * 0.1,
        "w2": (jax.random.normal(k3, (hidden_dim, dim), jnp.float32) / math.sqrt(hidden_dim)),
        "b2": jax.random.normal(k4, (1, dim), jnp.float32) * 0.1,
        # PyTorch BatchNorm1d default init
        "bn1_gamma": jnp.ones((1, hidden_dim), jnp.float32),
        "bn1_beta": jnp.zeros((1, hidden_dim), jnp.float32),
        "bn2_gamma": jnp.ones((1, dim), jnp.float32),
        "bn2_beta": jnp.zeros((1, dim), jnp.float32),
    }

    x = jax.random.normal(kx, (T, B, N, dim), jnp.float32)

    out = jax.block_until_ready(spiking_gfnn_forward(x, params))
    ref = jax.block_until_ready(spiking_gfnn_reference(x, params))

    assert out.shape == (T, B, N, dim)
    assert out.dtype == jnp.float32
    # Output is a spike train (values in {0, 1}).
    assert bool(jnp.all((out == 0.0) | (out == 1.0)))
    # Tolerate rare threshold flips from Pallas-vs-XLA float differences.
    mismatch_frac = float(jnp.mean(jnp.abs(out - ref)))
    assert mismatch_frac < 2e-3, f"mismatch fraction too high: {mismatch_frac}"

    print("KERNEL_OK")
</pallas_src>

<mosaic_0001>
module attributes {stable_mosaic.version = 11 : i64} {
  func.func @linear1_stats_kernel(%arg0: i32, %arg1: memref<128x32xbf16, #tpu.memory_space<vmem>>, %arg2: memref<32x32xbf16, #tpu.memory_space<vmem>>, %arg3: memref<32x32xbf16, #tpu.memory_space<vmem>>, %arg4: memref<1x32xf32, #tpu.memory_space<vmem>>, %arg5: memref<1x32xf32, #tpu.memory_space<vmem>>, %arg6: memref<128x32xbf16, #tpu.memory_space<vmem>>, %arg7: memref<128x32xbf16, #tpu.memory_space<vmem>>, %arg8: memref<1x32xf32, #tpu.memory_space<vmem>>, %arg9: memref<1x32xf32, #tpu.memory_space<vmem>>, %arg10: memref<8x32xf32, #tpu.memory_space<vmem>>, %arg11: memref<8x32xf32, #tpu.memory_space<vmem>>) attributes {dimension_semantics = [#tpu.dimension_semantics<arbitrary>], iteration_bounds = array<i64: 1>, scalar_prefetch = 0 : i64, scratch_operands = 2 : i64, tpu.core_type = #tpu.core_type<tc>, window_params = [{transform_indices = @transform_0, window_bounds = array<i64: 128, 32>}, {pipeline_mode = #tpu.pipeline_mode<synchronous>, transform_indices = @transform_1, window_bounds = array<i64: 32, 32>}, {pipeline_mode = #tpu.pipeline_mode<synchronous>, transform_indices = @transform_2, window_bounds = array<i64: 32, 32>}, {pipeline_mode = #tpu.pipeline_mode<synchronous>, transform_indices = @transform_3, window_bounds = array<i64: 1, 32>}, {pipeline_mode = #tpu.pipeline_mode<synchronous>, transform_indices = @transform_4, window_bounds = array<i64: 1, 32>}, {transform_indices = @transform_5, window_bounds = array<i64: 128, 32>}, {transform_indices = @transform_6, window_bounds = array<i64: 128, 32>}, {pipeline_mode = #tpu.pipeline_mode<synchronous>, transform_indices = @transform_7, window_bounds = array<i64: 1, 32>}, {pipeline_mode = #tpu.pipeline_mode<synchronous>, transform_indices = @transform_8, window_bounds = array<i64: 1, 32>}]} {
    %c0_i32 = arith.constant 0 : i32
    %0 = arith.cmpi eq, %arg0, %c0_i32 : i32
    %1 = arith.extui %0 : i1 to i32
    %c0_i32_0 = arith.constant 0 : i32
    %2 = arith.cmpi ne, %1, %c0_i32_0 : i32
    scf.if %2 {
      %cst_27 = arith.constant 0.000000e+00 : f32
      %31 = vector.broadcast %cst_27 : f32 to vector<8x32xf32>
      %c0_28 = arith.constant 0 : index
      %c0_29 = arith.constant 0 : index
      %32 = vector.load %arg10[%c0_28, %c0_29] : memref<8x32xf32, #tpu.memory_space<vmem>>, vector<8x32xf32>
      tpu.vector_store %arg10[%c0_28, %c0_29], %31 {strides = array<i32>} : memref<8x32xf32, #tpu.memory_space<vmem>>, vector<8x32xf32>,
      %cst_30 = arith.constant 0.000000e+00 : f32
      %33 = vector.broadcast %cst_30 : f32 to vector<8x32xf32>
      %c0_31 = arith.constant 0 : index
      %c0_32 = arith.constant 0 : index
      %34 = vector.load %arg11[%c0_31, %c0_32] : memref<8x32xf32, #tpu.memory_space<vmem>>, vector<8x32xf32>
      tpu.vector_store %arg11[%c0_31, %c0_32], %33 {strides = array<i32>} : memref<8x32xf32, #tpu.memory_space<vmem>>, vector<8x32xf32>,
    } else {
    }
    %c0 = arith.constant 0 : index
    %c0_1 = arith.constant 0 : index
    %3 = vector.load %arg1[%c0, %c0_1] : memref<128x32xbf16, #tpu.memory_space<vmem>>, vector<128x32xbf16>
    %c0_2 = arith.constant 0 : index
    %c0_3 = arith.constant 0 : index
    %4 = vector.load %arg2[%c0_2, %c0_3] : memref<32x32xbf16, #tpu.memory_space<vmem>>, vector<32x32xbf16>
    %cst = arith.constant dense<0.000000e+00> : vector<128x32xf32>
    %5 = tpu.matmul %3, %4, %cst {dimension_numbers = #tpu.dot_dimension_numbers<[1], [0], [0], [1], [0, 0, 1, 1], [], []>} : vector<128x32xbf16>, vector<32x32xbf16>, vector<128x32xf32> -> vector<128x32xf32>
    %c0_4 = arith.constant 0 : index
    %c0_5 = arith.constant 0 : index
    %6 = vector.load %arg4[%c0_4, %c0_5] : memref<1x32xf32, #tpu.memory_space<vmem>>, vector<1x32xf32>
    %7 = vector.broadcast %6 : vector<1x32xf32> to vector<128x32xf32>
    %8 = arith.addf %5, %7 : vector<128x32xf32>
    %c0_6 = arith.constant 0 : index
    %c0_7 = arith.constant 0 : index
    %9 = vector.load %arg3[%c0_6, %c0_7] : memref<32x32xbf16, #tpu.memory_space<vmem>>, vector<32x32xbf16>
    %cst_8 = arith.constant dense<0.000000e+00> : vector<128x32xf32>
    %10 = tpu.matmul %3, %9, %cst_8 {dimension_numbers = #tpu.dot_dimension_numbers<[1], [0], [0], [1], [0, 0, 1, 1], [], []>} : vector<128x32xbf16>, vector<32x32xbf16>, vector<128x32xf32> -> vector<128x32xf32>
    %c0_9 = arith.constant 0 : index
    %c0_10 = arith.constant 0 : index
    %11 = vector.load %arg5[%c0_9, %c0_10] : memref<1x32xf32, #tpu.memory_space<vmem>>, vector<1x32xf32>
    %12 = vector.broadcast %11 : vector<1x32xf32> to vector<128x32xf32>
    %13 = arith.addf %10, %12 : vector<128x32xf32>
    %14 = arith.truncf %8 : vector<128x32xf32> to vector<128x32xbf16>
    %c0_11 = arith.constant 0 : index
    %c0_12 = arith.constant 0 : index
    %15 = vector.load %arg6[%c0_11, %c0_12] : memref<128x32xbf16, #tpu.memory_space<vmem>>, vector<128x32xbf16>
    tpu.vector_store %arg6[%c0_11, %c0_12], %14 {strides = array<i32>} : memref<128x32xbf16, #tpu.memory_space<vmem>>, vector<128x32xbf16>,
    %16 = arith.truncf %13 : vector<128x32xf32> to vector<128x32xbf16>
    %c0_13 = arith.constant 0 : index
    %c0_14 = arith.constant 0 : index
    %17 = vector.load %arg7[%c0_13, %c0_14] : memref<128x32xbf16, #tpu.memory_space<vmem>>, vector<128x32xbf16>
    tpu.vector_store %arg7[%c0_13, %c0_14], %16 {strides = array<i32>} : memref<128x32xbf16, #tpu.memory_space<vmem>>, vector<128x32xbf16>,
    %18 = vector.shape_cast %8 : vector<128x32xf32> to vector<16x8x32xf32>
    %c0_15 = arith.constant 0 : index
    %c0_16 = arith.constant 0 : index
    %19 = vector.load %arg10[%c0_15, %c0_16] : memref<8x32xf32, #tpu.memory_space<vmem>>, vector<8x32xf32>
    %cst_17 = arith.constant dense<0.000000e+00> : vector<8x32xf32>
    %20 = vector.multi_reduction <add>, %18, %cst_17 [0] : vector<16x8x32xf32> to vector<8x32xf32>
    %21 = arith.addf %19, %20 : vector<8x32xf32>
    %c0_18 = arith.constant 0 : index
    %c0_19 = arith.constant 0 : index
    %22 = vector.load %arg10[%c0_18, %c0_19] : memref<8x32xf32, #tpu.memory_space<vmem>>, vector<8x32xf32>
    tpu.vector_store %arg10[%c0_18, %c0_19], %21 {strides = array<i32>} : memref<8x32xf32, #tpu.memory_space<vmem>>, vector<8x32xf32>,
    %c0_20 = arith.constant 0 : index
    %c0_21 = arith.constant 0 : index
    %23 = vector.load %arg11[%c0_20, %c0_21] : memref<8x32xf32, #tpu.memory_space<vmem>>, vector<8x32xf32>
    %24 = arith.mulf %18, %18 : vector<16x8x32xf32>
    %cst_22 = arith.constant dense<0.000000e+00> : vector<8x32xf32>
    %25 = vector.multi_reduction <add>, %24, %cst_22 [0] : vector<16x8x32xf32> to vector<8x32xf32>
    %26 = arith.addf %23, %25 : vector<8x32xf32>
    %c0_23 = arith.constant 0 : index
    %c0_24 = arith.constant 0 : index
    %27 = vector.load %arg11[%c0_23, %c0_24] : memref<8x32xf32, #tpu.memory_space<vmem>>, vector<8x32xf32>
    tpu.vector_store %arg11[%c0_23, %c0_24], %26 {strides = array<i32>} : memref<8x32xf32, #tpu.memory_space<vmem>>, vector<8x32xf32>,
    %c0_i32_25 = arith.constant 0 : i32
    %28 = arith.cmpi eq, %arg0, %c0_i32_25 : i32
    %29 = arith.extui %28 : i1 to i32
    %c0_i32_26 = arith.constant 0 : i32
    %30 = arith.cmpi ne, %29, %c0_i32_26 : i32
    scf.if %30 {
      %c0_27 = arith.constant 0 : index
      %c0_28 = arith.constant 0 : index
      %31 = vector.load %arg10[%c0_27, %c0_28] : memref<8x32xf32, #tpu.memory_space<vmem>>, vector<8x32xf32>
      %cst_29 = arith.constant dense<0.000000e+00> : vector<32xf32>
      %32 = vector.multi_reduction <add>, %31, %cst_29 [0] : vector<8x32xf32> to vector<32xf32>
      %33 = vector.shape_cast %32 : vector<32xf32> to vector<1x32xf32>
      %c0_30 = arith.constant 0 : index
      %c0_31 = arith.constant 0 : index
      %34 = vector.load %arg8[%c0_30, %c0_31] : memref<1x32xf32, #tpu.memory_space<vmem>>, vector<1x32xf32>
      tpu.vector_store %arg8[%c0_30, %c0_31], %33 {strides = array<i32>} : memref<1x32xf32, #tpu.memory_space<vmem>>, vector<1x32xf32>,
      %c0_32 = arith.constant 0 : index
      %c0_33 = arith.constant 0 : index
      %35 = vector.load %arg11[%c0_32, %c0_33] : memref<8x32xf32, #tpu.memory_space<vmem>>, vector<8x32xf32>
      %cst_34 = arith.constant dense<0.000000e+00> : vector<32xf32>
      %36 = vector.multi_reduction <add>, %35, %cst_34 [0] : vector<8x32xf32> to vector<32xf32>
      %37 = vector.shape_cast %36 : vector<32xf32> to vector<1x32xf32>
      %c0_35 = arith.constant 0 : index
      %c0_36 = arith.constant 0 : index
      %38 = vector.load %arg9[%c0_35, %c0_36] : memref<1x32xf32, #tpu.memory_space<vmem>>, vector<1x32xf32>
      tpu.vector_store %arg9[%c0_35, %c0_36], %37 {strides = array<i32>} : memref<1x32xf32, #tpu.memory_space<vmem>>, vector<1x32xf32>,
    } else {
    }
    return
  }
  func.func @transform_0(%arg0: i32) -> (i32, i32) {
    %c0_i32 = arith.constant 0 : i32
    %c0_i32_0 = arith.constant 0 : i32
    return %arg0, %c0_i32 : i32, i32
  }
  func.func @transform_1(%arg0: i32) -> (i32, i32) {
    %c0_i32 = arith.constant 0 : i32
    %c0_i32_0 = arith.constant 0 : i32
    %c0_i32_1 = arith.constant 0 : i32
    return %c0_i32, %c0_i32_0 : i32, i32
  }
  func.func @transform_2(%arg0: i32) -> (i32, i32) {
    %c0_i32 = arith.constant 0 : i32
    %c0_i32_0 = arith.constant 0 : i32
    %c0_i32_1 = arith.constant 0 : i32
    return %c0_i32, %c0_i32_0 : i32, i32
  }
  func.func @transform_3(%arg0: i32) -> (i32, i32) {
    %c0_i32 = arith.constant 0 : i32
    %c0_i32_0 = arith.constant 0 : i32
    %c0_i32_1 = arith.constant 0 : i32
    return %c0_i32, %c0_i32_0 : i32, i32
  }
  func.func @transform_4(%arg0: i32) -> (i32, i32) {
    %c0_i32 = arith.constant 0 : i32
    %c0_i32_0 = arith.constant 0 : i32
    %c0_i32_1 = arith.constant 0 : i32
    return %c0_i32, %c0_i32_0 : i32, i32
  }
  func.func @transform_5(%arg0: i32) -> (i32, i32) {
    %c0_i32 = arith.constant 0 : i32
    %c0_i32_0 = arith.constant 0 : i32
    return %arg0, %c0_i32 : i32, i32
  }
  func.func @transform_6(%arg0: i32) -> (i32, i32) {
    %c0_i32 = arith.constant 0 : i32
    %c0_i32_0 = arith.constant 0 : i32
    return %arg0, %c0_i32 : i32, i32
  }
  func.func @transform_7(%arg0: i32) -> (i32, i32) {
    %c0_i32 = arith.constant 0 : i32
    %c0_i32_0 = arith.constant 0 : i32
    %c0_i32_1 = arith.constant 0 : i32
    return %c0_i32, %c0_i32_0 : i32, i32
  }
  func.func @transform_8(%arg0: i32) -> (i32, i32) {
    %c0_i32 = arith.constant 0 : i32
    %c0_i32_0 = arith.constant 0 : i32
    %c0_i32_1 = arith.constant 0 : i32
    return %c0_i32, %c0_i32_0 : i32, i32
  }
}

</mosaic_0001>

<llo_original>
// kernel: tpu_custom_call.1
$region0: #{tpu_custom_call.1}
  #allocation0 [shape = 'u32[]', space=smem, size = 0x4, offset = 0x4, fixed_abs, tag = 'smem constant byte address 0x4 - core index']
  #allocation1 [shape = 'u32[144,128]{1,0:T(1,128)}', space=vmem, size = 0x12000, scoped, tag = 'internal scratch']
  #allocation2 [shape = 'f32[8,32]{1,0:T(8,128)}', space=vmem, size = 0x1000, scoped, tag = 'scratch operand']
  #allocation3 [shape = 'f32[8,32]{1,0:T(8,128)}', space=vmem, size = 0x1000, scoped, tag = 'scratch operand']
  %s0 = inlined_call_operand.vmem [shape: bf16[128,32], index: 0, kind: input, shape index: {}]
  %s1 = inlined_call_operand.vmem [shape: bf16[32,32], index: 1, kind: input, shape index: {}]
  %s2 = inlined_call_operand.vmem [shape: bf16[32,32], index: 2, kind: input, shape index: {}]
  %s3 = inlined_call_operand.vmem [shape: f32[1,32], index: 3, kind: input, shape index: {}]
  %s4 = inlined_call_operand.vmem [shape: f32[1,32], index: 4, kind: input, shape index: {}]
  %s5 = inlined_call_operand.vmem [shape: bf16[128,32], index: 5, kind: output, shape index: {0}]
  %s6 = inlined_call_operand.vmem [shape: bf16[128,32], index: 6, kind: output, shape index: {1}]
  %s7 = inlined_call_operand.hbm [shape: f32[1,32], index: 7, kind: output, shape index: {2}]
  %s8 = inlined_call_operand.hbm [shape: f32[1,32], index: 8, kind: output, shape index: {3}]
  %9 = xla_tuple %s5, %s6, %s7, %s8
  %s10 = sld [smem:[#allocation0]]
  $region62: #{tpu_custom_call.1} parent=0
    _
  %s12 = ssub.s32 1, %s10
  %s13 = scalar_select 0, %s12, %s10
  $region1: #{tpu_custom_call.1} parent=0
    #allocation4 [shape = 'u8[512]{0}', space=vmem, size = 0x400, scoped, tag = 'output window, operand 2, single buffered']
    #allocation5 [shape = 's32[1]{0}', space=sflag, size = 0x4, scoped, tag = 'scoped memory for tpu_custom_call.1']
    #allocation6 [shape = 'u8[512]{0}', space=vmem, size = 0x400, scoped, tag = 'output window, operand 3, single buffered']
    #allocation7 [shape = 's32[1]{0}', space=sflag, size = 0x4, scoped, tag = 'scoped memory for tpu_custom_call.1']
    %14 = vsyncpa [#allocation5], 0
    %15 = vsyncpa [#allocation7], 0
    // Predicated region
    $region2: #{tpu_custom_call.1} parent=1 // pred_check
      _
    $region3: #{tpu_custom_call.1} parent=1 // pred_check_branch
      %17 = sbr.rel (0) target = $region5
    $region4: #{tpu_custom_call.1} parent=1 // pred_region
      _
    $region5: #{tpu_custom_call.1} parent=1 // pred_fallthru
      _
    // Predicated region
    $region6: #{tpu_custom_call.1} parent=1 // pred_check
      _
    $region7: #{tpu_custom_call.1} parent=1 // pred_check_branch
      %19 = sbr.rel (0) target = $region9
    $region8: #{tpu_custom_call.1} parent=1 // pred_region
      _
    $region9: #{tpu_custom_call.1} parent=1 // pred_fallthru
      _
    // Predicated region
    $region10: #{tpu_custom_call.1} parent=1 // pred_check
      _
    $region11: #{tpu_custom_call.1} parent=1 // pred_check_branch
      %21 = sbr.rel (0) target = $region13
    $region12: #{tpu_custom_call.1} parent=1 // pred_region
      _
    $region13: #{tpu_custom_call.1} parent=1 // pred_fallthru
      _
    // Predicated region
    $region14: #{tpu_custom_call.1} parent=1 // pred_check
      _
    $region15: #{tpu_custom_call.1} parent=1 // pred_check_branch
      %23 = sbr.rel (0) target = $region17
    $region16: #{tpu_custom_call.1} parent=1 // pred_region
      _
    $region17: #{tpu_custom_call.1} parent=1 // pred_fallthru
      _
    // Predicated region
    $region18: #{tpu_custom_call.1} parent=1 // pred_check
      _
    $region19: #{tpu_custom_call.1} parent=1 // pred_check_branch
      %25 = sbr.rel (0) target = $region21
    $region20: #{tpu_custom_call.1} parent=1 // pred_region
      _
    $region21: #{tpu_custom_call.1} parent=1 // pred_fallthru
      _
    %p27 = scmp.eq.s32.totalorder 0, 0
    // Predicated region
    $region22: #{tpu_custom_call.1} parent=1 // pred_check
      %p28 = pneg %p27
    $region23: #{tpu_custom_call.1} parent=1 // pred_check_branch
      %30 = sbr.rel (%p28) target = $region25
    $region24: #{tpu_custom_call.1} parent=1 // pred_region
      %vm31 = vcmask 261120
      %32 = vst.msk [vmem:[#allocation2] sm:$0xff] %vm31, 0.0
      %33 = vst.msk [vmem:[#allocation3] sm:$0xff] %vm31, 0.0
    $region25: #{tpu_custom_call.1} parent=1 // pred_fallthru
      _
    %v34 = vld [vmem:[%s0] sm:$0xf]
    %v35 = vld [vmem:[%s0 + $0x4] sm:$0xf]
    %v36 = vld [vmem:[%s0 + $0x8] sm:$0xf]
    %v37 = vld [vmem:[%s0 + $0xc] sm:$0xf]
    %v38 = vld [vmem:[%s0 + $0x10] sm:$0xf]
    %v39 = vld [vmem:[%s0 + $0x14] sm:$0xf]
    %v40 = vld [vmem:[%s0 + $0x18] sm:$0xf]
    %v41 = vld [vmem:[%s0 + $0x1c] sm:$0xf]
    %v42 = vld [vmem:[%s0 + $0x20] sm:$0xf]
    %v43 = vld [vmem:[%s0 + $0x24] sm:$0xf]
    %v44 = vld [vmem:[%s0 + $0x28] sm:$0xf]
    %v45 = vld [vmem:[%s0 + $0x2c] sm:$0xf]
    %v46 = vld [vmem:[%s0 + $0x30] sm:$0xf]
    %v47 = vld [vmem:[%s0 + $0x34] sm:$0xf]
    %v48 = vld [vmem:[%s0 + $0x38] sm:$0xf]
    %v49 = vld [vmem:[%s0 + $0x3c] sm:$0xf]
    %v50 = vld [vmem:[%s1] sm:$0xf]
    %v51 = vld [vmem:[%s1 + $0x4] sm:$0xf]
    %v52 = vld [vmem:[%s1 + $0x8] sm:$0xf]
    %v53 = vld [vmem:[%s1 + $0xc] sm:$0xf]
    %v54 = vld [vmem:[%s3] sm:$0x1]
    %v56 = vlaneseq
    %v57 = vshrl.u32 %v56, 7
    %v58 = vsub.s32 0, %v57
    %v59 = vrot.slane %v54, %v58
    %v77 = vunpack.c.l.b16 %v34
    %v78 = vunpack.c.l.b16 %v35
    %v79 = vunpack.c.l.b16 %v36
    %v80 = vunpack.c.l.b16 %v37
    %v81 = vunpack.c.l.b16 %v38
    %v82 = vunpack.c.l.b16 %v39
    %v83 = vunpack.c.l.b16 %v40
    %v84 = vunpack.c.l.b16 %v41
    %v85 = vunpack.c.l.b16 %v42
    %v86 = vunpack.c.l.b16 %v43
    %v87 = vunpack.c.l.b16 %v44
    %v88 = vunpack.c.l.b16 %v45
    %v89 = vunpack.c.l.b16 %v46
    %v90 = vunpack.c.l.b16 %v47
    %v91 = vunpack.c.l.b16 %v48
    %v92 = vunpack.c.l.b16 %v49
    %v93 = vpack.c.b16 %v78, %v77
    %v94 = vpack.c.b16 %v80, %v79
    %v95 = vpack.c.b16 %v82, %v81
    %v96 = vpack.c.b16 %v84, %v83
    %v97 = vpack.c.b16 %v86, %v85
    %v98 = vpack.c.b16 %v88, %v87
    %v99 = vpack.c.b16 %v90, %v89
    %v100 = vpack.c.b16 %v92, %v91
    %v105 = vunpack.c.l.b16 %v50
    %v106 = vunpack.c.l.b16 %v51
    %v107 = vunpack.c.l.b16 %v52
    %v108 = vunpack.c.l.b16 %v53
    %v109 = vpack.c.b16 %v106, %v105
    %v110 = vpack.c.b16 %v108, %v107
    %vm113 = vcmask 261120
    %v115 = vsel %vm113, %v93, 0
    %v118 = vsel %vm113, %v94, 0
    %v121 = vsel %vm113, %v95, 0
    %v124 = vsel %vm113, %v96, 0
    %v127 = vsel %vm113, %v97, 0
    %v130 = vsel %vm113, %v98, 0
    %v133 = vsel %vm113, %v99, 0
    %v136 = vsel %vm113, %v100, 0
    %138 = vmatprep.subr.bf16.mxu0 0
    %139 = vmatpush1.bf16.msra.mxu0 0
    %140 = vmatprep.subr.bf16.mxu0 0
    %141 = vmatpush1.bf16.msra.mxu0 0
    %142 = vmatprep.subr.bf16.mxu0 0
    %143 = vmatpush1.bf16.msra.mxu0 0
    %144 = vmatprep.subr.bf16.mxu0 0
    %145 = vmatpush1.bf16.msra.mxu0 0
    %146 = vmatprep.subr.bf16.mxu0 0
    %147 = vmatpush1.bf16.msra.mxu0 0
    %148 = vmatprep.subr.bf16.mxu0 0
    %149 = vmatpush1.bf16.msra.mxu0 0
    %150 = vmatprep.subr.bf16.mxu0 0
    %151 = vmatpush1.bf16.msra.mxu0 %v110
    %152 = vmatprep.subr.bf16.mxu0 0
    %153 = vmatpush1.bf16.msra.mxu0 %v109
    %154 = vmatprep.subr.bf16.mxu0 0
    %155 = vmatpush2.bf16.msra.mxu0 0
    %156 = vmatprep.subr.bf16.mxu0 0
    %157 = vmatpush2.bf16.msra.mxu0 0
    %158 = vmatprep.subr.bf16.mxu0 0
    %159 = vmatpush2.bf16.msra.mxu0 0
    %160 = vmatprep.subr.bf16.mxu0 0
    %161 = vmatpush2.bf16.msra.mxu0 0
    %162 = vmatprep.subr.bf16.mxu0 0
    %163 = vmatpush2.bf16.msra.mxu0 0
    %164 = vmatprep.subr.bf16.mxu0 0
    %165 = vmatpush2.bf16.msra.mxu0 0
    %166 = vmatprep.subr.bf16.mxu0 0
    %167 = vmatpush2.bf16.msra.mxu0 0
    %168 = vmatprep.subr.bf16.mxu0 0
    %169 = vmatpush2.bf16.msra.mxu0 0
    %170 = vmatprep.mubr.bf16.mxu0 0
    %171 = vmatmul.mubr.bf16.gmra.mxu0 %v115
    %v172 = vpop.f32.mrf.mxu0
    %v173 = vadd.f32 %v59, %v172
    %v174 = vpop.f32.mrf.mxu0
    %v175 = vpop.f32.mrf.mxu0
    %v176 = vadd.f32 %v59, %v175
    %v177 = vpop.f32.mrf.mxu0
    %178 = vmatprep.mubr.bf16.mxu0 0
    %179 = vmatmul.mubr.bf16.gmra.mxu0 %v118
    %v180 = vpop.f32.mrf.mxu0
    %v181 = vadd.f32 %v59, %v180
    %v182 = vpop.f32.mrf.mxu0
    %v183 = vpop.f32.mrf.mxu0
    %v184 = vadd.f32 %v59, %v183
    %v185 = vpop.f32.mrf.mxu0
    %186 = vmatprep.mubr.bf16.mxu0 0
    %187 = vmatmul.mubr.bf16.gmra.mxu0 %v121
    %v188 = vpop.f32.mrf.mxu0
    %v189 = vadd.f32 %v59, %v188
    %v190 = vpop.f32.mrf.mxu0
    %v191 = vpop.f32.mrf.mxu0
    %v192 = vadd.f32 %v59, %v191
    %v193 = vpop.f32.mrf.mxu0
    %194 = vmatprep.mubr.bf16.mxu0 0
    %195 = vmatmul.mubr.bf16.gmra.mxu0 %v124
    %v196 = vpop.f32.mrf.mxu0
    %v197 = vadd.f32 %v59, %v196
    %v198 = vpop.f32.mrf.mxu0
    %v199 = vpop.f32.mrf.mxu0
    %v200 = vadd.f32 %v59, %v199
    %v201 = vpop.f32.mrf.mxu0
    %202 = vmatprep.mubr.bf16.mxu0 0
    %203 = vmatmul.mubr.bf16.gmra.mxu0 %v127
    %v204 = vpop.f32.mrf.mxu0
    %v205 = vadd.f32 %v59, %v204
    %v206 = vpop.f32.mrf.mxu0
    %v207 = vpop.f32.mrf.mxu0
    %v208 = vadd.f32 %v59, %v207
    %v209 = vpop.f32.mrf.mxu0
    %210 = vmatprep.mubr.bf16.mxu0 0
    %211 = vmatmul.mubr.bf16.gmra.mxu0 %v130
    %v212 = vpop.f32.mrf.mxu0
    %v213 = vadd.f32 %v59, %v212
    %v214 = vpop.f32.mrf.mxu0
    %v215 = vpop.f32.mrf.mxu0
    %v216 = vadd.f32 %v59, %v215
    %v217 = vpop.f32.mrf.mxu0
    %218 = vmatprep.mubr.bf16.mxu0 0
    %219 = vmatmul.mubr.bf16.gmra.mxu0 %v133
    %v220 = vpop.f32.mrf.mxu0
    %v221 = vadd.f32 %v59, %v220
    %v222 = vpop.f32.mrf.mxu0
    %v223 = vpop.f32.mrf.mxu0
    %v224 = vadd.f32 %v59, %v223
    %v225 = vpop.f32.mrf.mxu0
    %226 = vmatprep.mubr.bf16.mxu0 0
    %227 = vmatmul.mubr.bf16.gmra.mxu0 %v136
    %v228 = vpop.f32.mrf.mxu0
    %v229 = vadd.f32 %v59, %v228
    %v230 = vpop.f32.mrf.mxu0
    %v231 = vpop.f32.mrf.mxu0
    %v232 = vadd.f32 %v59, %v231
    %v233 = vpop.f32.mrf.mxu0
    %234 = vdwg.mxu0
    %v235 = vld [vmem:[%s2] sm:$0xf]
    %v236 = vld [vmem:[%s2 + $0x4] sm:$0xf]
    %v237 = vld [vmem:[%s2 + $0x8] sm:$0xf]
    %v238 = vld [vmem:[%s2 + $0xc] sm:$0xf]
    %v239 = vld [vmem:[%s4] sm:$0x1]
    %v241 = vlaneseq
    %v242 = vshrl.u32 %v241, 7
    %v243 = vsub.s32 0, %v242
    %v244 = vrot.slane %v239, %v243
    %v250 = vunpack.c.l.b16 %v235
    %v251 = vunpack.c.l.b16 %v236
    %v252 = vunpack.c.l.b16 %v237
    %v253 = vunpack.c.l.b16 %v238
    %v254 = vpack.c.b16 %v251, %v250
    %v255 = vpack.c.b16 %v253, %v252
    %258 = vmatprep.subr.bf16.mxu0 0
    %259 = vmatpush1.bf16.msra.mxu0 0
    %260 = vmatprep.subr.bf16.mxu0 0
    %261 = vmatpush1.bf16.msra.mxu0 0
    %262 = vmatprep.subr.bf16.mxu0 0
    %263 = vmatpush1.bf16.msra.mxu0 0
    %264 = vmatprep.subr.bf16.mxu0 0
    %265 = vmatpush1.bf16.msra.mxu0 0
    %266 = vmatprep.subr.bf16.mxu0 0
    %267 = vmatpush1.bf16.msra.mxu0 0
    %268 = vmatprep.subr.bf16.mxu0 0
    %269 = vmatpush1.bf16.msra.mxu0 0
    %270 = vmatprep.subr.bf16.mxu0 0
    %271 = vmatpush1.bf16.msra.mxu0 %v255
    %272 = vmatprep.subr.bf16.mxu0 0
    %273 = vmatpush1.bf16.msra.mxu0 %v254
    %274 = vmatprep.subr.bf16.mxu0 0
    %275 = vmatpush2.bf16.msra.mxu0 0
    %276 = vmatprep.subr.bf16.mxu0 0
    %277 = vmatpush2.bf16.msra.mxu0 0
    %278 = vmatprep.subr.bf16.mxu0 0
    %279 = vmatpush2.bf16.msra.mxu0 0
    %280 = vmatprep.subr.bf16.mxu0 0
    %281 = vmatpush2.bf16.msra.mxu0 0
    %282 = vmatprep.subr.bf16.mxu0 0
    %283 = vmatpush2.bf16.msra.mxu0 0
    %284 = vmatprep.subr.bf16.mxu0 0
    %285 = vmatpush2.bf16.msra.mxu0 0
    %286 = vmatprep.subr.bf16.mxu0 0
    %287 = vmatpush2.bf16.msra.mxu0 0
    %288 = vmatprep.subr.bf16.mxu0 0
    %289 = vmatpush2.bf16.msra.mxu0 0
    %290 = vmatprep.mubr.bf16.mxu0 0
    %291 = vmatmul.mubr.bf16.gmra.mxu0 %v115
    %v292 = vpop.f32.mrf.mxu0
    %v293 = vadd.f32 %v244, %v292
    %v294 = vpop.f32.mrf.mxu0
    %v295 = vpop.f32.mrf.mxu0
    %v296 = vadd.f32 %v244, %v295
    %v297 = vpop.f32.mrf.mxu0
    %298 = vmatprep.mubr.bf16.mxu0 0
    %299 = vmatmul.mubr.bf16.gmra.mxu0 %v118
    %v300 = vpop.f32.mrf.mxu0
    %v301 = vadd.f32 %v244, %v300
    %v302 = vpop.f32.mrf.mxu0
    %v303 = vpop.f32.mrf.mxu0
    %v304 = vadd.f32 %v244, %v303
    %v305 = vpop.f32.mrf.mxu0
    %306 = vmatprep.mubr.bf16.mxu0 0
    %307 = vmatmul.mubr.bf16.gmra.mxu0 %v121
    %v308 = vpop.f32.mrf.mxu0
    %v309 = vadd.f32 %v244, %v308
    %v310 = vpop.f32.mrf.mxu0
    %v311 = vpop.f32.mrf.mxu0
    %v312 = vadd.f32 %v244, %v311
    %v313 = vpop.f32.mrf.mxu0
    %314 = vmatprep.mubr.bf16.mxu0 0
    %315 = vmatmul.mubr.bf16.gmra.mxu0 %v124
    %v316 = vpop.f32.mrf.mxu0
    %v317 = vadd.f32 %v244, %v316
    %v318 = vpop.f32.mrf.mxu0
    %v319 = vpop.f32.mrf.mxu0
    %v320 = vadd.f32 %v244, %v319
    %v321 = vpop.f32.mrf.mxu0
    %322 = vmatprep.mubr.bf16.mxu0 0
    %323 = vmatmul.mubr.bf16.gmra.mxu0 %v127
    %v324 = vpop.f32.mrf.mxu0
    %v325 = vadd.f32 %v244, %v324
    %v326 = vpop.f32.mrf.mxu0
    %v327 = vpop.f32.mrf.mxu0
    %v328 = vadd.f32 %v244, %v327
    %v329 = vpop.f32.mrf.mxu0
    %330 = vmatprep.mubr.bf16.mxu0 0
    %331 = vmatmul.mubr.bf16.gmra.mxu0 %v130
    %v332 = vpop.f32.mrf.mxu0
    %v333 = vadd.f32 %v244, %v332
    %v334 = vpop.f32.mrf.mxu0
    %v335 = vpop.f32.mrf.mxu0
    %v336 = vadd.f32 %v244, %v335
    %v337 = vpop.f32.mrf.mxu0
    %338 = vmatprep.mubr.bf16.mxu0 0
    %339 = vmatmul.mubr.bf16.gmra.mxu0 %v133
    %v340 = vpop.f32.mrf.mxu0
    %v341 = vadd.f32 %v244, %v340
    %v342 = vpop.f32.mrf.mxu0
    %v343 = vpop.f32.mrf.mxu0
    %v344 = vadd.f32 %v244, %v343
    %v345 = vpop.f32.mrf.mxu0
    %346 = vmatprep.mubr.bf16.mxu0 0
    %347 = vmatmul.mubr.bf16.gmra.mxu0 %v136
    %v348 = vpop.f32.mrf.mxu0
    %v349 = vadd.f32 %v244, %v348
    %v350 = vpop.f32.mrf.mxu0
    %v351 = vpop.f32.mrf.mxu0
    %v352 = vadd.f32 %v244, %v351
    %v353 = vpop.f32.mrf.mxu0
    %354 = vdwg.mxu0
    %v355 = vpack.c.bf16 %v176, %v173
    %v356 = vpack.c.bf16 %v184, %v181
    %v357 = vpack.c.bf16 %v192, %v189
    %v358 = vpack.c.bf16 %v200, %v197
    %v359 = vpack.c.bf16 %v208, %v205
    %v360 = vpack.c.bf16 %v216, %v213
    %v361 = vpack.c.bf16 %v224, %v221
    %v362 = vpack.c.bf16 %v232, %v229
    %v371 = vunpack.c.l.b16 %v355
    %v372 = vunpack.c.h.b16 %v355
    %v373 = vunpack.c.l.b16 %v356
    %v374 = vunpack.c.h.b16 %v356
    %v375 = vunpack.c.l.b16 %v357
    %v376 = vunpack.c.h.b16 %v357
    %v377 = vunpack.c.l.b16 %v358
    %v378 = vunpack.c.h.b16 %v358
    %v379 = vunpack.c.l.b16 %v359
    %v380 = vunpack.c.h.b16 %v359
    %v381 = vunpack.c.l.b16 %v360
    %v382 = vunpack.c.h.b16 %v360
    %v383 = vunpack.c.l.b16 %v361
    %v384 = vunpack.c.h.b16 %v361
    %v385 = vunpack.c.l.b16 %v362
    %v386 = vunpack.c.h.b16 %v362
    %v387 = vpack.c.b16 %v371, %v371
    %v388 = vpack.c.b16 %v372, %v372
    %v389 = vpack.c.b16 %v373, %v373
    %v390 = vpack.c.b16 %v374, %v374
    %v391 = vpack.c.b16 %v375, %v375
    %v392 = vpack.c.b16 %v376, %v376
    %v393 = vpack.c.b16 %v377, %v377
    %v394 = vpack.c.b16 %v378, %v378
    %v395 = vpack.c.b16 %v379, %v379
    %v396 = vpack.c.b16 %v380, %v380
    %v397 = vpack.c.b16 %v381, %v381
    %v398 = vpack.c.b16 %v382, %v382
    %v399 = vpack.c.b16 %v383, %v383
    %v400 = vpack.c.b16 %v384, %v384
    %v401 = vpack.c.b16 %v385, %v385
    %v402 = vpack.c.b16 %v386, %v386
    %vm419 = vcmask 257024
    %420 = vst.msk [vmem:[%s5] sm:$0xf] %vm419, %v387
    %421 = vst.msk [vmem:[%s5 + $0x4] sm:$0xf] %vm419, %v388
    %422 = vst.msk [vmem:[%s5 + $0x8] sm:$0xf] %vm419, %v389
    %423 = vst.msk [vmem:[%s5 + $0xc] sm:$0xf] %vm419, %v390
    %424 = vst.msk [vmem:[%s5 + $0x10] sm:$0xf] %vm419, %v391
    %425 = vst.msk [vmem:[%s5 + $0x14] sm:$0xf] %vm419, %v392
    %426 = vst.msk [vmem:[%s5 + $0x18] sm:$0xf] %vm419, %v393
    %427 = vst.msk [vmem:[%s5 + $0x1c] sm:$0xf] %vm419, %v394
    %428 = vst.msk [vmem:[%s5 + $0x20] sm:$0xf] %vm419, %v395
    %429 = vst.msk [vmem:[%s5 + $0x24] sm:$0xf] %vm419, %v396
    %430 = vst.msk [vmem:[%s5 + $0x28] sm:$0xf] %vm419, %v397
    %431 = vst.msk [vmem:[%s5 + $0x2c] sm:$0xf] %vm419, %v398
    %432 = vst.msk [vmem:[%s5 + $0x30] sm:$0xf] %vm419, %v399
    %433 = vst.msk [vmem:[%s5 + $0x34] sm:$0xf] %vm419, %v400
    %434 = vst.msk [vmem:[%s5 + $0x38] sm:$0xf] %vm419, %v401
    %435 = vst.msk [vmem:[%s5 + $0x3c] sm:$0xf] %vm419, %v402
    %v436 = vpack.c.bf16 %v296, %v293
    %v437 = vpack.c.bf16 %v304, %v301
    %v438 = vpack.c.bf16 %v312, %v309
    %v439 = vpack.c.bf16 %v320, %v317
    %v440 = vpack.c.bf16 %v328, %v325
    %v441 = vpack.c.bf16 %v336, %v333
    %v442 = vpack.c.bf16 %v344, %v341
    %v443 = vpack.c.bf16 %v352, %v349
    %v452 = vunpack.c.l.b16 %v436
    %v453 = vunpack.c.h.b16 %v436
    %v454 = vunpack.c.l.b16 %v437
    %v455 = vunpack.c.h.b16 %v437
    %v456 = vunpack.c.l.b16 %v438
    %v457 = vunpack.c.h.b16 %v438
    %v458 = vunpack.c.l.b16 %v439
    %v459 = vunpack.c.h.b16 %v439
    %v460 = vunpack.c.l.b16 %v440
    %v461 = vunpack.c.h.b16 %v440
    %v462 = vunpack.c.l.b16 %v441
    %v463 = vunpack.c.h.b16 %v441
    %v464 = vunpack.c.l.b16 %v442
    %v465 = vunpack.c.h.b16 %v442
    %v466 = vunpack.c.l.b16 %v443
    %v467 = vunpack.c.h.b16 %v443
    %v468 = vpack.c.b16 %v452, %v452
    %v469 = vpack.c.b16 %v453, %v453
    %v470 = vpack.c.b16 %v454, %v454
    %v471 = vpack.c.b16 %v455, %v455
    %v472 = vpack.c.b16 %v456, %v456
    %v473 = vpack.c.b16 %v457, %v457
    %v474 = vpack.c.b16 %v458, %v458
    %v475 = vpack.c.b16 %v459, %v459
    %v476 = vpack.c.b16 %v460, %v460
    %v477 = vpack.c.b16 %v461, %v461
    %v478 = vpack.c.b16 %v462, %v462
    %v479 = vpack.c.b16 %v463, %v463
    %v480 = vpack.c.b16 %v464, %v464
    %v481 = vpack.c.b16 %v465, %v465
    %v482 = vpack.c.b16 %v466, %v466
    %v483 = vpack.c.b16 %v467, %v467
    %500 = vst.msk [vmem:[%s6] sm:$0xf] %vm419, %v468
    %501 = vst.msk [vmem:[%s6 + $0x4] sm:$0xf] %vm419, %v469
    %502 = vst.msk [vmem:[%s6 + $0x8] sm:$0xf] %vm419, %v470
    %503 = vst.msk [vmem:[%s6 + $0xc] sm:$0xf] %vm419, %v471
    %504 = vst.msk [vmem:[%s6 + $0x10] sm:$0xf] %vm419, %v472
    %505 = vst.msk [vmem:[%s6 + $0x14] sm:$0xf] %vm419, %v473
    %506 = vst.msk [vmem:[%s6 + $0x18] sm:$0xf] %vm419, %v474
    %507 = vst.msk [vmem:[%s6 + $0x1c] sm:$0xf] %vm419, %v475
    %508 = vst.msk [vmem:[%s6 + $0x20] sm:$0xf] %vm419, %v476
    %509 = vst.msk [vmem:[%s6 + $0x24] sm:$0xf] %vm419, %v477
    %510 = vst.msk [vmem:[%s6 + $0x28] sm:$0xf] %vm419, %v478
    %511 = vst.msk [vmem:[%s6 + $0x2c] sm:$0xf] %vm419, %v479
    %512 = vst.msk [vmem:[%s6 + $0x30] sm:$0xf] %vm419, %v480
    %513 = vst.msk [vmem:[%s6 + $0x34] sm:$0xf] %vm419, %v481
    %514 = vst.msk [vmem:[%s6 + $0x38] sm:$0xf] %vm419, %v482
    %515 = vst.msk [vmem:[%s6 + $0x3c] sm:$0xf] %vm419, %v483
    %v516 = vld [vmem:[#allocation2] sm:$0xff]
    %v517 = vsel %vm113, %v173, 0.0
    %v518 = vsel %vm113, %v176, 0.0
    %v519 = vadd.f32 %v517, %v518
    %v520 = vsel %vm113, %v181, 0.0
    %v521 = vadd.f32 %v519, %v520
    %v522 = vsel %vm113, %v184, 0.0
    %v523 = vadd.f32 %v521, %v522
    %v524 = vsel %vm113, %v189, 0.0
    %v525 = vadd.f32 %v523, %v524
    %v526 = vsel %vm113, %v192, 0.0
    %v527 = vadd.f32 %v525, %v526
    %v528 = vsel %vm113, %v197, 0.0
    %v529 = vadd.f32 %v527, %v528
    %v530 = vsel %vm113, %v200, 0.0
    %v531 = vadd.f32 %v529, %v530
    %v532 = vsel %vm113, %v205, 0.0
    %v533 = vadd.f32 %v531, %v532
    %v534 = vsel %vm113, %v208, 0.0
    %v535 = vadd.f32 %v533, %v534
    %v536 = vsel %vm113, %v213, 0.0
    %v537 = vadd.f32 %v535, %v536
    %v538 = vsel %vm113, %v216, 0.0
    %v539 = vadd.f32 %v537, %v538
    %v540 = vsel %vm113, %v221, 0.0
    %v541 = vadd.f32 %v539, %v540
    %v542 = vsel %vm113, %v224, 0.0
    %v543 = vadd.f32 %v541, %v542
    %v544 = vsel %vm113, %v229, 0.0
    %v545 = vadd.f32 %v543, %v544
    %v546 = vsel %vm113, %v232, 0.0
    %v547 = vadd.f32 %v545, %v546
    %v548 = vadd.f32 %v516, %v547
    %549 = vst.msk [vmem:[#allocation2] sm:$0xff] %vm113, %v548
    %v550 = vld [vmem:[#allocation3] sm:$0xff]
    %v551 = vmul.f32 %v173, %v173
    %v552 = vmul.f32 %v176, %v176
    %v553 = vmul.f32 %v181, %v181
    %v554 = vmul.f32 %v184, %v184
    %v555 = vmul.f32 %v189, %v189
    %v556 = vmul.f32 %v192, %v192
    %v557 = vmul.f32 %v197, %v197
    %v558 = vmul.f32 %v200, %v200
    %v559 = vmul.f32 %v205, %v205
    %v560 = vmul.f32 %v208, %v208
    %v561 = vmul.f32 %v213, %v213
    %v562 = vmul.f32 %v216, %v216
    %v563 = vmul.f32 %v221, %v221
    %v564 = vmul.f32 %v224, %v224
    %v565 = vmul.f32 %v229, %v229
    %v566 = vmul.f32 %v232, %v232
    %v567 = vsel %vm113, %v551, 0.0
    %v568 = vsel %vm113, %v552, 0.0
    %v569 = vadd.f32 %v567, %v568
    %v570 = vsel %vm113, %v553, 0.0
    %v571 = vadd.f32 %v569, %v570
    %v572 = vsel %vm113, %v554, 0.0
    %v573 = vadd.f32 %v571, %v572
    %v574 = vsel %vm113, %v555, 0.0
    %v575 = vadd.f32 %v573, %v574
    %v576 = vsel %vm113, %v556, 0.0
    %v577 = vadd.f32 %v575, %v576
    %v578 = vsel %vm113, %v557, 0.0
    %v579 = vadd.f32 %v577, %v578
    %v580 = vsel %vm113, %v558, 0.0
    %v581 = vadd.f32 %v579, %v580
    %v582 = vsel %vm113, %v559, 0.0
    %v583 = vadd.f32 %v581, %v582
    %v584 = vsel %vm113, %v560, 0.0
    %v585 = vadd.f32 %v583, %v584
    %v586 = vsel %vm113, %v561, 0.0
    %v587 = vadd.f32 %v585, %v586
    %v588 = vsel %vm113, %v562, 0.0
    %v589 = vadd.f32 %v587, %v588
    %v590 = vsel %vm113, %v563, 0.0
    %v591 = vadd.f32 %v589, %v590
    %v592 = vsel %vm113, %v564, 0.0
    %v593 = vadd.f32 %v591, %v592
    %v594 = vsel %vm113, %v565, 0.0
    %v595 = vadd.f32 %v593, %v594
    %v596 = vsel %vm113, %v566, 0.0
    %v597 = vadd.f32 %v595, %v596
    %v598 = vadd.f32 %v550, %v597
    %599 = vst.msk [vmem:[#allocation3] sm:$0xff] %vm113, %v598
    // Predicated region
    $region26: #{tpu_custom_call.1} parent=1 // pred_check
      %p600 = pneg %p27
    $region27: #{tpu_custom_call.1} parent=1 // pred_check_branch
      %602 = sbr.rel (%p600) target = $region29
    $region28: #{tpu_custom_call.1} parent=1 // pred_region
      %v603 = vld [vmem:[#allocation2] sm:$0xff]
      %v604 = vsel %vm113, %v603, 0.0
      %v605 = vrot.slane %v604, 4
      %v606 = vadd.f32 %v604, %v605
      %v607 = vrot.slane %v606, 2
      %v608 = vadd.f32 %v606, %v607
      %v609 = vrot.slane %v608, 1
      %v610 = vadd.f32 %v608, %v609
      %vm611 = vcmask 253952
      %612 = vst.msk [vmem:[#allocation4] sm:$0x1] %vm611, %v610
      %v613 = vld [vmem:[#allocation3] sm:$0xff]
      %v614 = vsel %vm113, %v613, 0.0
      %v615 = vrot.slane %v614, 4
      %v616 = vadd.f32 %v614, %v615
      %v617 = vrot.slane %v616, 2
      %v618 = vadd.f32 %v616, %v617
      %v619 = vrot.slane %v618, 1
      %v620 = vadd.f32 %v618, %v619
      %621 = vst.msk [vmem:[#allocation6] sm:$0x1] %vm611, %v620
    $region29: #{tpu_custom_call.1} parent=1 // pred_fallthru
      _
    // Predicated region
    $region30: #{tpu_custom_call.1} parent=1 // pred_check
      _
    $region31: #{tpu_custom_call.1} parent=1 // pred_check_branch
      %623 = sbr.rel (0) target = $region33
    $region32: #{tpu_custom_call.1} parent=1 // pred_region
      _
    $region33: #{tpu_custom_call.1} parent=1 // pred_fallthru
      _
    // Predicated region
    $region34: #{tpu_custom_call.1} parent=1 // pred_check
      _
    $region35: #{tpu_custom_call.1} parent=1 // pred_check_branch
      %625 = sbr.rel (0) target = $region37
    $region36: #{tpu_custom_call.1} parent=1 // pred_region
      _
    $region37: #{tpu_custom_call.1} parent=1 // pred_fallthru
      _
    // Predicated region
    $region38: #{tpu_custom_call.1} parent=1 // pred_check
      _
    $region39: #{tpu_custom_call.1} parent=1 // pred_check_branch
      %627 = sbr.rel (0) target = $region41
    $region40: #{tpu_custom_call.1} parent=1 // pred_region
      %s629 = ssub.s32 16, 16
      %630 = vsyncadd [#allocation5], %s629
      %s632 = sshll.u32 [#allocation4], 4
      %s633 = int_to_ptr.vmem [resolvable:$true] %s632
      %635 = dma.vmem_to_hbm [thread:$0]  %s633, 16, %s7, [#allocation5]
    $region41: #{tpu_custom_call.1} parent=1 // pred_fallthru
      _
    // Predicated region
    $region42: #{tpu_custom_call.1} parent=1 // pred_check
      _
    $region43: #{tpu_custom_call.1} parent=1 // pred_check_branch
      %637 = sbr.rel (0) target = $region45
    $region44: #{tpu_custom_call.1} parent=1 // pred_region
      %s639 = ssub.s32 16, 16
      %640 = vsyncadd [#allocation7], %s639
      %s642 = sshll.u32 [#allocation6], 4
      %s643 = int_to_ptr.vmem [resolvable:$true] %s642
      %645 = dma.vmem_to_hbm [thread:$0]  %s643, 16, %s8, [#allocation7]
    $region45: #{tpu_custom_call.1} parent=1 // pred_fallthru
      _
    // Predicated region
    $region46: #{tpu_custom_call.1} parent=1 // pred_check
      _
    $region47: #{tpu_custom_call.1} parent=1 // pred_check_branch
      %647 = sbr.rel (0) target = $region49
    $region48: #{tpu_custom_call.1} parent=1 // pred_region
      _
    $region49: #{tpu_custom_call.1} parent=1 // pred_fallthru
      _
    // Predicated region
    $region50: #{tpu_custom_call.1} parent=1 // pred_check
      _
    $region51: #{tpu_custom_call.1} parent=1 // pred_check_branch
      %649 = sbr.rel (0) target = $region53
    $region52: #{tpu_custom_call.1} parent=1 // pred_region
      _
    $region53: #{tpu_custom_call.1} parent=1 // pred_fallthru
      _
    // Predicated region
    $region54: #{tpu_custom_call.1} parent=1 // pred_check
      _
    $region55: #{tpu_custom_call.1} parent=1 // pred_check_branch
      %651 = sbr.rel (0) target = $region57
    $region56: #{tpu_custom_call.1} parent=1 // pred_region
      %652 = dma.done [#allocation5], 16
    $region57: #{tpu_custom_call.1} parent=1 // pred_fallthru
      _
    // Predicated region
    $region58: #{tpu_custom_call.1} parent=1 // pred_check
      _
    $region59: #{tpu_custom_call.1} parent=1 // pred_check_branch
      %654 = sbr.rel (0) target = $region61
    $region60: #{tpu_custom_call.1} parent=1 // pred_region
      %655 = dma.done [#allocation7], 16
    $region61: #{tpu_custom_call.1} parent=1 // pred_fallthru
      _
    %656 = vsyncpa [#allocation5], 1
    %657 = vsyncpa [#allocation7], 1

</llo_original>
